<compile_context>
chip_gen: v5e
topology: v5e:2x2
jax: 0.10.0
libtpu: 0.0.40
codegen_flags: <defaults>
</compile_context>

<pallas_src>
import functools

import jax
import jax.numpy as jnp
from jax.experimental import pallas as pl
from jax.experimental.pallas import tpu as pltpu


def _round_up(n, m):
    return ((n + m - 1) // m) * m


def _value_kernel(x_ref, w_ref, b_ref, o_ref, *, precision):
    # x_ref: (TB, D) VMEM  -- streamed / double-buffered batch tile (native dtype)
    # w_ref: (1, D)  VMEM  -- weight row, same block every step (VMEM-resident)
    # b_ref: (1, 1)  f32 SMEM -- bias scalar
    # o_ref: (1, TB) f32 VMEM -- lane-dense output row for this tile
    y = jax.lax.dot_general(
        w_ref[...], x_ref[...],
        dimension_numbers=(((1,), (1,)), ((), ())),   # contract both over D ("NT" matmul)
        preferred_element_type=jnp.float32,
        precision=precision,
    )                                                 # (1, TB), lane-dense
    o_ref[...] = y + b_ref[0, 0]


def value_network_forward(x, weight, bias, *, block_b=None):
    """x: (B, D); weight: (1, D) (PyTorch nn.Linear layout); bias: (1,). Returns (B,) f32."""
    B, D = x.shape
    # Stream x in its native dtype (no astype pass); cast only the tiny weight.
    w = weight.reshape(1, D).astype(x.dtype)
    b2 = bias.reshape(1, 1).astype(jnp.float32)
    itemsize = jnp.dtype(x.dtype).itemsize

    # --- batch tile selection -------------------------------------------
    if block_b is None:
        if B <= 256:
            tb = B                                   # tiny path: single full block
        else:
            # ~8 MiB input tile: per-step overhead negligible, and the
            # double-buffered (x + out) footprint fits every generation's VMEM.
            tile_budget = 8 * 1024 * 1024
            rows = max(256, tile_budget // max(D * itemsize, 1))
            rows = min(rows, -(-B // 2))             # >= 2 tiles -> both v7x TCs busy
            tb = max(128, (rows // 128) * 128)
    else:
        tb = min(int(block_b), B)
    grid = (pl.cdiv(B, tb),)
    b_pad = grid[0] * tb       # output allocated at whole tiles; tail sliced off below

    # --- VMEM budget: 2x x tile + 2x out tile + resident weight ----------
    x_tile = tb * D * itemsize
    out_tile = 8 * tb * 4                            # (1, tb) f32, sublane-padded to 8
    w_tile = 8 * _round_up(D, 128) * itemsize
    vmem_limit = 2 * x_tile + 2 * out_tile + 2 * w_tile + (2 << 20)
    vmem_limit = int(min(max(vmem_limit, 16 << 20), 48 << 20))   # safe on v7x's 64 MiB part

    precision = jax.lax.Precision.HIGHEST if x.dtype == jnp.float32 else None
    kernel = functools.partial(_value_kernel, precision=precision)

    out = pl.pallas_call(
        kernel,
        out_shape=jax.ShapeDtypeStruct((1, b_pad), jnp.float32),
        grid=grid,
        in_specs=[
            # x: batch tiles, pipelined. The last (ragged) tile is a partial
            # load; its undefined rows only feed output lanes >= B (sliced off).
            pl.BlockSpec((tb, D), lambda i: (i, 0)),
            pl.BlockSpec((1, D), lambda i: (0, 0)),   # w: same block -> VMEM-resident
            pl.BlockSpec(memory_space=pltpu.SMEM),    # bias scalar in SMEM
        ],
        out_specs=pl.BlockSpec((1, tb), lambda i: (0, i)),  # lane-dense full-lane stores
        compiler_params=pltpu.CompilerParams(
            dimension_semantics=("parallel",),        # v7x: tiles shard across both TCs
            vmem_limit_bytes=vmem_limit,
        ),
        cost_estimate=pl.CostEstimate(
            flops=2 * B * D,
            transcendentals=0,
            bytes_accessed=B * D * itemsize + D * itemsize + B * 4,
        ),
    )(x, w, b2)

    # squeeze(-1) + drop the ragged-tile tail — glue outside the kernel.
    return out[0, :B]


def init_value_network_params(input_dim):
    """Matches ValueNetwork._initialize_weights: zeros for weight and bias."""
    weight = jnp.zeros((1, input_dim), dtype=jnp.float32)   # nn.Linear(D, 1).weight
    bias = jnp.zeros((1,), dtype=jnp.float32)               # nn.Linear(D, 1).bias
    return weight, bias


if __name__ == "__main__":
    key = jax.random.PRNGKey(0)
    B, D = 8, 32  # batch of states, state feature dim (input_shape[0] = 32)

    x = jax.random.normal(key, (B, D), dtype=jnp.float32)
    weight, bias = init_value_network_params(D)

    value = value_network_forward(x, weight, bias)
    jax.block_until_ready(value)

    assert value.shape == (B,), value.shape
    # With zero-initialized weights and bias, the value estimate is exactly 0.
    assert bool(jnp.all(value == 0.0))

    # Sanity-check against a plain-JAX reference with nonzero params (tiny path).
    w2 = jax.random.normal(jax.random.PRNGKey(1), (1, D), dtype=jnp.float32) * 0.1
    b2 = jax.random.normal(jax.random.PRNGKey(2), (1,), dtype=jnp.float32)
    got = value_network_forward(x, w2, b2)
    ref = (x @ w2.T + b2)[:, 0]
    jax.block_until_ready(got)
    assert jnp.allclose(got, ref, atol=1e-5, rtol=1e-5)

    # Multi-tile grid + ragged last tile, no input padding (B=300, tb=128 -> grid=(3,)).
    B3 = 300
    x3 = jax.random.normal(jax.random.PRNGKey(3), (B3, D), dtype=jnp.float32)
    got3 = value_network_forward(x3, w2, b2, block_b=128)
    ref3 = (x3 @ w2.T + b2)[:, 0]
    jax.block_until_ready(got3)
    assert got3.shape == (B3,), got3.shape
    assert jnp.allclose(got3, ref3, atol=1e-5, rtol=1e-5)

    # Native-bf16 streaming path (no wrapper upcast; f32 accumulate in-kernel).
    xb = x3.astype(jnp.bfloat16)
    gotb = value_network_forward(xb, w2, b2, block_b=128)
    refb = (xb.astype(jnp.float32) @ w2.astype(jnp.bfloat16).astype(jnp.float32).T + b2)[:, 0]
    jax.block_until_ready(gotb)
    assert gotb.shape == (B3,), gotb.shape
    assert jnp.allclose(gotb, refb, atol=5e-2, rtol=5e-2)

    print("KERNEL_OK")
</pallas_src>

<mosaic_0001>
module attributes {stable_mosaic.version = 11 : i64} {
  func.func @_value_kernel(%arg0: i32, %arg1: memref<8x32xf32, #tpu.memory_space<vmem>>, %arg2: memref<1x32xf32, #tpu.memory_space<vmem>>, %arg3: memref<1x1xf32, #tpu.memory_space<smem>>, %arg4: memref<1x8xf32, #tpu.memory_space<vmem>>) attributes {dimension_semantics = [#tpu.dimension_semantics<parallel>], iteration_bounds = array<i64: 1>, scalar_prefetch = 0 : i64, scratch_operands = 0 : i64, tpu.core_type = #tpu.core_type<tc>, window_params = [{transform_indices = @transform_0, window_bounds = array<i64: 8, 32>}, {pipeline_mode = #tpu.pipeline_mode<synchronous>, transform_indices = @transform_1, window_bounds = array<i64: 1, 32>}, {transform_indices = @transform_2, window_bounds = array<i64: 1, 1>}, {transform_indices = @transform_3, window_bounds = array<i64: 1, 8>}]} {
    %c0 = arith.constant 0 : index
    %c0_0 = arith.constant 0 : index
    %0 = vector.load %arg2[%c0, %c0_0] : memref<1x32xf32, #tpu.memory_space<vmem>>, vector<1x32xf32>
    %c0_1 = arith.constant 0 : index
    %c0_2 = arith.constant 0 : index
    %1 = vector.load %arg1[%c0_1, %c0_2] : memref<8x32xf32, #tpu.memory_space<vmem>>, vector<8x32xf32>
    %cst = arith.constant dense<0.000000e+00> : vector<1x8xf32>
    %2 = tpu.matmul %0, %1, %cst {dimension_numbers = #tpu.dot_dimension_numbers<[1], [1], [0], [0], [0, 0, 1, 0], [], []>, precision = #tpu.contract_precision<fp32>} : vector<1x32xf32>, vector<8x32xf32>, vector<1x8xf32> -> vector<1x8xf32>
    %c0_3 = arith.constant 0 : index
    %c0_4 = arith.constant 0 : index
    %3 = memref.load %arg3[%c0_3, %c0_4] : memref<1x1xf32, #tpu.memory_space<smem>>
    %4 = vector.broadcast %3 : f32 to vector<1x8xf32>
    %5 = arith.addf %2, %4 : vector<1x8xf32>
    %c0_5 = arith.constant 0 : index
    %c0_6 = arith.constant 0 : index
    %6 = vector.load %arg4[%c0_5, %c0_6] : memref<1x8xf32, #tpu.memory_space<vmem>>, vector<1x8xf32>
    tpu.vector_store %arg4[%c0_5, %c0_6], %5 {strides = array<i32>} : memref<1x8xf32, #tpu.memory_space<vmem>>, vector<1x8xf32>,
    return
  }
  func.func @transform_0(%arg0: i32) -> (i32, i32) {
    %c0_i32 = arith.constant 0 : i32
    %c0_i32_0 = arith.constant 0 : i32
    return %arg0, %c0_i32 : i32, i32
  }
  func.func @transform_1(%arg0: i32) -> (i32, i32) {
    %c0_i32 = arith.constant 0 : i32
    %c0_i32_0 = arith.constant 0 : i32
    %c0_i32_1 = arith.constant 0 : i32
    return %c0_i32, %c0_i32_0 : i32, i32
  }
  func.func @transform_2(%arg0: i32) -> (i32, i32) {
    %c0_i32 = arith.constant 0 : i32
    %c0_i32_0 = arith.constant 0 : i32
    %c0_i32_1 = arith.constant 0 : i32
    return %c0_i32, %c0_i32_0 : i32, i32
  }
  func.func @transform_3(%arg0: i32) -> (i32, i32) {
    %c0_i32 = arith.constant 0 : i32
    %c0_i32_0 = arith.constant 0 : i32
    return %c0_i32, %arg0 : i32, i32
  }
}

</mosaic_0001>

<llo_original>
// kernel: tpu_custom_call.1
$region0: #{tpu_custom_call.1}
  #allocation0 [shape = 'u32[]', space=smem, size = 0x4, offset = 0x4, fixed_abs, tag = 'smem constant byte address 0x4 - core index']
  #allocation1 [shape = 'u32[72,128]{1,0:T(1,128)}', space=vmem, size = 0x9000, scoped, tag = 'internal scratch']
  #allocation2 [shape = 'f32[1,1]{1,0:T(1,128)S(6)}', space=smem, size = 0x200, scoped, tag = 'scoped memory for tpu_custom_call.1']
  %s0 = inlined_call_operand.hbm [shape: f32[8,32], index: 0, kind: input, shape index: {}]
  %s1 = inlined_call_operand.vmem [shape: f32[1,32], index: 1, kind: input, shape index: {}]
  %s2 = inlined_call_operand.<no memory space> [shape: f32[1,1], index: 2, kind: input, shape index: {}]
  %s3 = inlined_call_operand.hbm [shape: f32[1,8], index: 3, kind: output, shape index: {}]
  %s4 = sld [smem:[#allocation0]]
  $region26: #{tpu_custom_call.1} parent=0
    _
  %s6 = ssub.s32 1, %s4
  %s7 = scalar_select 0, %s6, %s4
  %8 = sst [smem:[#allocation2]] %s2
  $region1: #{tpu_custom_call.1} parent=0
    #allocation3 [shape = 'u8[4096]{0}', space=vmem, size = 0x1000, scoped, tag = 'input window, operand 0, single buffered']
    #allocation4 [shape = 's32[1]{0}', space=sflag, size = 0x4, scoped, tag = 'scoped memory for tpu_custom_call.1']
    #allocation5 [shape = 's32[1]{0}', space=sflag, size = 0x4, scoped, tag = 'scoped memory for tpu_custom_call.1']
    #allocation6 [shape = 'u8[512]{0}', space=vmem, size = 0x400, scoped, tag = 'output window, operand 0, single buffered']
    %9 = vsyncpa [#allocation4], 0
    %10 = vsyncpa [#allocation5], 0
    // Predicated region
    $region2: #{tpu_custom_call.1} parent=1 // pred_check
      _
    $region3: #{tpu_custom_call.1} parent=1 // pred_check_branch
      %12 = sbr.rel (0) target = $region5
    $region4: #{tpu_custom_call.1} parent=1 // pred_region
      %14 = vsyncadd [#allocation4], 0
      %s16 = sshll.u32 %s0, 4
      %s17 = int_to_ptr.hbm [resolvable:$true] %s16
      %s18 = sshll.u32 [#allocation3], 4
      %s19 = int_to_ptr.vmem [resolvable:$true] %s18
      %21 = dma.hbm_to_vmem [thread:$0]  %s17, 128, %s19, [#allocation4]
    $region5: #{tpu_custom_call.1} parent=1 // pred_fallthru
      _
    // Predicated region
    $region6: #{tpu_custom_call.1} parent=1 // pred_check
      _
    $region7: #{tpu_custom_call.1} parent=1 // pred_check_branch
      %23 = sbr.rel (0) target = $region9
    $region8: #{tpu_custom_call.1} parent=1 // pred_region
      _
    $region9: #{tpu_custom_call.1} parent=1 // pred_fallthru
      _
    // Predicated region
    $region10: #{tpu_custom_call.1} parent=1 // pred_check
      _
    $region11: #{tpu_custom_call.1} parent=1 // pred_check_branch
      %25 = sbr.rel (0) target = $region13
    $region12: #{tpu_custom_call.1} parent=1 // pred_region
      _
    $region13: #{tpu_custom_call.1} parent=1 // pred_fallthru
      _
    // Predicated region
    $region14: #{tpu_custom_call.1} parent=1 // pred_check
      _
    $region15: #{tpu_custom_call.1} parent=1 // pred_check_branch
      %27 = sbr.rel (0) target = $region17
    $region16: #{tpu_custom_call.1} parent=1 // pred_region
      %29 = dma.done [#allocation4], 128
    $region17: #{tpu_custom_call.1} parent=1 // pred_fallthru
      _
    %v30 = vld [vmem:[%s1] sm:$0x1]
    %v31 = vld [vmem:[#allocation3] sm:$0xff]
    %s32 = sld [smem:[#allocation2]]
    %v33 = vstv %s32
    %vm34 = vcmask 261120
    %v36 = vsel %vm34, %v30, 0
    %v39 = vsel %vm34, %v31, 0
    %41 = vmatpush.xpose.msra.mxu0 0.0
    %42 = vmatpush.xpose.msra.mxu0 0.0
    %43 = vmatpush.xpose.msra.mxu0 0.0
    %44 = vmatpush.xpose.msra.mxu0 0.0
    %45 = vmatpush.xpose.msra.mxu0 0.0
    %46 = vmatpush.xpose.msra.mxu0 0.0
    %47 = vmatpush.xpose.msra.mxu0 0.0
    %48 = vmatpush.xpose.msra.mxu0 0.0
    %49 = vmatpush.xpose.msra.mxu0 0.0
    %50 = vmatpush.xpose.msra.mxu0 0.0
    %51 = vmatpush.xpose.msra.mxu0 0.0
    %52 = vmatpush.xpose.msra.mxu0 0.0
    %53 = vmatpush.xpose.msra.mxu0 0.0
    %54 = vmatpush.xpose.msra.mxu0 0.0
    %55 = vmatpush.xpose.msra.mxu0 0.0
    %v56 = vand.u32 %v39, 4294901760
    %57 = vmatpush.xpose.msra.mxu0 %v56
    %v58 = vand.u32 %v36, 4294901760
    %v59 = vsub.f32 %v36, %v58
    %v60 = vand.u32 %v59, 4294901760
    %v61 = vsub.f32 %v59, %v60
    %v62 = vand.u32 %v61, 4294901760
    %63 = vmatmul.f32.gmra.mxu0 %v62
    %v64 = vpop.f32.mrf.mxu0
    %v65 = vadd.f32 %v33, %v64
    %66 = vdwg.mxu0
    %67 = vmatpush.xpose.msra.mxu0 0.0
    %68 = vmatpush.xpose.msra.mxu0 0.0
    %69 = vmatpush.xpose.msra.mxu0 0.0
    %70 = vmatpush.xpose.msra.mxu0 0.0
    %71 = vmatpush.xpose.msra.mxu0 0.0
    %72 = vmatpush.xpose.msra.mxu0 0.0
    %73 = vmatpush.xpose.msra.mxu0 0.0
    %74 = vmatpush.xpose.msra.mxu0 0.0
    %75 = vmatpush.xpose.msra.mxu0 0.0
    %76 = vmatpush.xpose.msra.mxu0 0.0
    %77 = vmatpush.xpose.msra.mxu0 0.0
    %78 = vmatpush.xpose.msra.mxu0 0.0
    %79 = vmatpush.xpose.msra.mxu0 0.0
    %80 = vmatpush.xpose.msra.mxu0 0.0
    %81 = vmatpush.xpose.msra.mxu0 0.0
    %v82 = vand.u32 %v39, 4294901760
    %v83 = vsub.f32 %v39, %v82
    %v84 = vand.u32 %v83, 4294901760
    %v85 = vsub.f32 %v83, %v84
    %v86 = vand.u32 %v85, 4294901760
    %87 = vmatpush.xpose.msra.mxu0 %v86
    %v88 = vand.u32 %v36, 4294901760
    %89 = vmatmul.f32.gmra.mxu0 %v88
    %v90 = vpop.f32.mrf.mxu0
    %v91 = vadd.f32 %v65, %v90
    %92 = vdwg.mxu0
    %93 = vmatpush.xpose.msra.mxu0 0.0
    %94 = vmatpush.xpose.msra.mxu0 0.0
    %95 = vmatpush.xpose.msra.mxu0 0.0
    %96 = vmatpush.xpose.msra.mxu0 0.0
    %97 = vmatpush.xpose.msra.mxu0 0.0
    %98 = vmatpush.xpose.msra.mxu0 0.0
    %99 = vmatpush.xpose.msra.mxu0 0.0
    %100 = vmatpush.xpose.msra.mxu0 0.0
    %101 = vmatpush.xpose.msra.mxu0 0.0
    %102 = vmatpush.xpose.msra.mxu0 0.0
    %103 = vmatpush.xpose.msra.mxu0 0.0
    %104 = vmatpush.xpose.msra.mxu0 0.0
    %105 = vmatpush.xpose.msra.mxu0 0.0
    %106 = vmatpush.xpose.msra.mxu0 0.0
    %107 = vmatpush.xpose.msra.mxu0 0.0
    %v108 = vand.u32 %v39, 4294901760
    %v109 = vsub.f32 %v39, %v108
    %110 = vmatpush.xpose.msra.mxu0 %v109
    %v111 = vand.u32 %v36, 4294901760
    %v112 = vsub.f32 %v36, %v111
    %113 = vmatmul.f32.gmra.mxu0 %v112
    %v114 = vpop.f32.mrf.mxu0
    %v115 = vadd.f32 %v91, %v114
    %116 = vdwg.mxu0
    %117 = vmatpush.xpose.msra.mxu0 0.0
    %118 = vmatpush.xpose.msra.mxu0 0.0
    %119 = vmatpush.xpose.msra.mxu0 0.0
    %120 = vmatpush.xpose.msra.mxu0 0.0
    %121 = vmatpush.xpose.msra.mxu0 0.0
    %122 = vmatpush.xpose.msra.mxu0 0.0
    %123 = vmatpush.xpose.msra.mxu0 0.0
    %124 = vmatpush.xpose.msra.mxu0 0.0
    %125 = vmatpush.xpose.msra.mxu0 0.0
    %126 = vmatpush.xpose.msra.mxu0 0.0
    %127 = vmatpush.xpose.msra.mxu0 0.0
    %128 = vmatpush.xpose.msra.mxu0 0.0
    %129 = vmatpush.xpose.msra.mxu0 0.0
    %130 = vmatpush.xpose.msra.mxu0 0.0
    %131 = vmatpush.xpose.msra.mxu0 0.0
    %v132 = vand.u32 %v39, 4294901760
    %133 = vmatpush.xpose.msra.mxu0 %v132
    %v134 = vand.u32 %v36, 4294901760
    %v135 = vsub.f32 %v36, %v134
    %v136 = vand.u32 %v135, 4294901760
    %137 = vmatmul.f32.gmra.mxu0 %v136
    %v138 = vpop.f32.mrf.mxu0
    %v139 = vadd.f32 %v115, %v138
    %140 = vdwg.mxu0
    %141 = vmatpush.xpose.msra.mxu0 0.0
    %142 = vmatpush.xpose.msra.mxu0 0.0
    %143 = vmatpush.xpose.msra.mxu0 0.0
    %144 = vmatpush.xpose.msra.mxu0 0.0
    %145 = vmatpush.xpose.msra.mxu0 0.0
    %146 = vmatpush.xpose.msra.mxu0 0.0
    %147 = vmatpush.xpose.msra.mxu0 0.0
    %148 = vmatpush.xpose.msra.mxu0 0.0
    %149 = vmatpush.xpose.msra.mxu0 0.0
    %150 = vmatpush.xpose.msra.mxu0 0.0
    %151 = vmatpush.xpose.msra.mxu0 0.0
    %152 = vmatpush.xpose.msra.mxu0 0.0
    %153 = vmatpush.xpose.msra.mxu0 0.0
    %154 = vmatpush.xpose.msra.mxu0 0.0
    %155 = vmatpush.xpose.msra.mxu0 0.0
    %v156 = vand.u32 %v39, 4294901760
    %v157 = vsub.f32 %v39, %v156
    %v158 = vand.u32 %v157, 4294901760
    %159 = vmatpush.xpose.msra.mxu0 %v158
    %v160 = vand.u32 %v36, 4294901760
    %161 = vmatmul.f32.gmra.mxu0 %v160
    %v162 = vpop.f32.mrf.mxu0
    %v163 = vadd.f32 %v139, %v162
    %164 = vdwg.mxu0
    %165 = vmatpush.xpose.msra.mxu0 0.0
    %166 = vmatpush.xpose.msra.mxu0 0.0
    %167 = vmatpush.xpose.msra.mxu0 0.0
    %168 = vmatpush.xpose.msra.mxu0 0.0
    %169 = vmatpush.xpose.msra.mxu0 0.0
    %170 = vmatpush.xpose.msra.mxu0 0.0
    %171 = vmatpush.xpose.msra.mxu0 0.0
    %172 = vmatpush.xpose.msra.mxu0 0.0
    %173 = vmatpush.xpose.msra.mxu0 0.0
    %174 = vmatpush.xpose.msra.mxu0 0.0
    %175 = vmatpush.xpose.msra.mxu0 0.0
    %176 = vmatpush.xpose.msra.mxu0 0.0
    %177 = vmatpush.xpose.msra.mxu0 0.0
    %178 = vmatpush.xpose.msra.mxu0 0.0
    %179 = vmatpush.xpose.msra.mxu0 0.0
    %v180 = vand.u32 %v39, 4294901760
    %181 = vmatpush.xpose.msra.mxu0 %v180
    %v182 = vand.u32 %v36, 4294901760
    %183 = vmatmul.f32.gmra.mxu0 %v182
    %v184 = vpop.f32.mrf.mxu0
    %v185 = vadd.f32 %v163, %v184
    %186 = vdwg.mxu0
    %vm187 = vcmask 57344
    %188 = vst.msk [vmem:[#allocation6] sm:$0x1] %vm187, %v185
    // Predicated region
    $region18: #{tpu_custom_call.1} parent=1 // pred_check
      _
    $region19: #{tpu_custom_call.1} parent=1 // pred_check_branch
      %190 = sbr.rel (0) target = $region21
    $region20: #{tpu_custom_call.1} parent=1 // pred_region
      %192 = vsyncadd [#allocation5], 0
      %s194 = sshll.u32 [#allocation6], 4
      %s195 = int_to_ptr.vmem [resolvable:$true] %s194
      %s196 = sshll.u32 %s3, 4
      %s197 = int_to_ptr.hbm [resolvable:$true] %s196
      %199 = dma.vmem_to_hbm [thread:$0]  %s195, 16, %s197, [#allocation5]
    $region21: #{tpu_custom_call.1} parent=1 // pred_fallthru
      _
    // Predicated region
    $region22: #{tpu_custom_call.1} parent=1 // pred_check
      _
    $region23: #{tpu_custom_call.1} parent=1 // pred_check_branch
      %201 = sbr.rel (0) target = $region25
    $region24: #{tpu_custom_call.1} parent=1 // pred_region
      %203 = dma.done [#allocation5], 16
    $region25: #{tpu_custom_call.1} parent=1 // pred_fallthru
      _
    %204 = vsyncpa [#allocation4], 1
    %205 = vsyncpa [#allocation5], 1

</llo_original>
